<compile_context>
chip_gen: v5e
topology: v5e:2x2
jax: 0.10.0
libtpu: 0.0.40
codegen_flags: <defaults>
</compile_context>

<pallas_src>
import jax
import jax.numpy as jnp
from jax import lax
from jax.experimental import pallas as pl
from jax.experimental.pallas import tpu as pltpu

# Small, module-consistent shapes.
B   = 2    # batch_size
S   = 8    # sequence_length
V   = 50   # vocab_size
E   = 16   # embed_dim
H   = 32   # hidden_size
OUT = 4    # output_size

# Packed-parameter slab layout (single VMEM operand).  All row offsets are
# multiples of the 8-row sublane tile because V_PAD and H are multiples of 8.
V_PAD   = ((V + 7) // 8) * 8            # 56 : pre-projected embedding rows [0, V)
ROW_WHH = V_PAD                         # 56 : Whh_fwd   rows [56,  88), lanes [0, 4H)
ROW_LF  = ROW_WHH + H                   # 88 : Wlab[:H]  rows [88, 120), lanes [0, OUT)
ROW_LB  = ROW_LF + H                    # 120: Wlab[H:]  rows [120,152), lanes [0, OUT)
ROW_BL  = ROW_LB + H                    # 152: blab      row  152,       lanes [0, OUT)
N_ROWS  = ((ROW_BL + 1 + 7) // 8) * 8   # 160 rows x 256 lanes f32  (~160 KB)


def bilstm_kernel(ids_ref, slab_ref, out_ref):
    """ids_ref:  SMEM (B, S) int32 token ids (indexed directly, seq-major access).
    slab_ref: VMEM (N_ROWS, 8H) packed parameters (see layout constants above).
    out_ref:  VMEM (B, OUT) logits."""

    # ---- per-lane constants for the single-EUP activation (hoisted, reused) ----
    # sigmoid(x) = 0.5*tanh(0.5x)+0.5 for the i/f/o lanes, tanh(x) for g lanes:
    # one tanh push per step covers all four gates.
    lane = lax.broadcasted_iota(jnp.int32, (1, 4 * H), 1)
    is_g = jnp.logical_and(lane >= 2 * H, lane < 3 * H)
    scale = jnp.where(is_g, 1.0, 0.5).astype(jnp.float32)   # pre- AND post-scale
    offset = jnp.where(is_g, 0.0, 0.5).astype(jnp.float32)

    def activate(gates):                                     # gates: (rows, 4H)
        a = jnp.tanh(gates * scale) * scale + offset         # one EUP push
        return a[:, 0:H], a[:, H:2 * H], a[:, 2 * H:3 * H], a[:, 3 * H:4 * H]

    # ---- parameter views (static, tile-aligned slices of the packed slab) ----
    whh = slab_ref[ROW_WHH:ROW_WHH + H, 0:4 * H]             # (H, 4H)

    # ---- in-kernel embedding gather: token id -> pre-projected gates row ----
    # Each row already holds x @ [Wih_f | Wih_b] + (b_f | b_b), so no input
    # projection matmul is needed inside the kernel.
    def token_row(b, t):
        return slab_ref[pl.ds(ids_ref[b, t], 1), :]          # (1, 8H)

    xg = [jnp.concatenate([token_row(b, t) for b in range(B)], axis=0)
          for t in range(S)]                                 # S x (B, 8H)

    # ---- fused zero-state steps: forward t=0 + the single backward step ----
    # lstm_output[-1][:, H:] is the reversed scan's FIRST step on x[S-1] from
    # zero state => h0 @ Whh_bwd == 0, so the backward direction needs zero
    # matmuls; both zero-state cells share one activation over (2B, 4H).
    first = jnp.concatenate([xg[0][:, 0:4 * H], xg[S - 1][:, 4 * H:8 * H]], axis=0)
    i, f, g, o = activate(first)
    c0 = i * g                                               # f * 0 == 0
    h0 = o * jnp.tanh(c0)                                    # (2B, H)
    h, c = h0[0:B, :], c0[0:B, :]                            # forward state after t=0
    h_bwd = h0[B:2 * B, :]                                   # backward output

    # ---- forward recurrence, steps 1..S-1, fully unrolled (S is static) ----
    # Only the h @ Whh matmul sits on the serial chain; kept in f32 (default
    # MXU lowering) to stay within the 1e-4 tolerance.
    for t in range(1, S):
        gates = xg[t][:, 0:4 * H] + jnp.dot(h, whh,
                                            preferred_element_type=jnp.float32)
        i, f, g, o = activate(gates)
        c = f * c + i * g
        h = o * jnp.tanh(c)

    # ---- final linear: split matmul avoids a lane concat at the 32-lane edge ----
    out_ref[...] = (
        jnp.dot(h, slab_ref[ROW_LF:ROW_LF + H, 0:OUT],
                preferred_element_type=jnp.float32)
        + jnp.dot(h_bwd, slab_ref[ROW_LB:ROW_LB + H, 0:OUT],
                  preferred_element_type=jnp.float32)
        + slab_ref[ROW_BL:ROW_BL + 1, 0:OUT])


def prepare_params(params):
    """One-time parameter preparation (hoisted out of the per-call forward):
    fold the input projection + biases into the embedding table and pack every
    weight into a single lane-aligned VMEM slab."""
    w_in = jnp.concatenate([params["wih_f"], params["wih_b"]], axis=1)   # (E, 8H)
    b_in = jnp.concatenate([params["b_f"], params["b_b"]], axis=1)       # (1, 8H)
    emb_proj = params["embedding"] @ w_in + b_in                         # (V, 8H)

    slab = jnp.zeros((N_ROWS, 8 * H), jnp.float32)
    slab = slab.at[0:V, :].set(emb_proj)
    slab = slab.at[ROW_WHH:ROW_WHH + H, 0:4 * H].set(params["whh_f"])
    slab = slab.at[ROW_LF:ROW_LF + H, 0:OUT].set(params["wlab"][:H, :])
    slab = slab.at[ROW_LB:ROW_LB + H, 0:OUT].set(params["wlab"][H:, :])
    slab = slab.at[ROW_BL, 0:OUT].set(params["blab"][0])
    return {"slab": slab}


def bilstm_forward(token_ids, prepared):
    """Per-call path: exactly ONE pallas_call.  token_ids: (B, S) int32."""
    vmem = pl.BlockSpec(memory_space=pltpu.MemorySpace.VMEM)
    smem = pl.BlockSpec(memory_space=pltpu.MemorySpace.SMEM)
    return pl.pallas_call(
        bilstm_kernel,
        out_shape=jax.ShapeDtypeStruct((B, OUT), jnp.float32),
        in_specs=[smem, vmem],
        out_specs=vmem,
    )(token_ids, prepared["slab"])


def init_params(key):
    ks = jax.random.split(key, 9)
    u = lambda k, shape, lo, hi: jax.random.uniform(k, shape, jnp.float32, lo, hi)

    # nn.Embedding weight then .uniform_(-1, 1) (padding row also overwritten).
    embedding = u(ks[0], (V, E), -1.0, 1.0)

    # nn.LSTM default init: U(-1/sqrt(H), 1/sqrt(H)); b = b_ih + b_hh folded.
    kb = 1.0 / (H ** 0.5)
    wih_f = u(ks[1], (E, 4 * H), -kb, kb)
    whh_f = u(ks[2], (H, 4 * H), -kb, kb)
    b_f   = u(ks[3], (1, 4 * H), -kb, kb)
    wih_b = u(ks[4], (E, 4 * H), -kb, kb)
    whh_b = u(ks[5], (H, 4 * H), -kb, kb)   # unused: backward scan starts from h=0
    b_b   = u(ks[6], (1, 4 * H), -kb, kb)

    # nn.Linear(hidden*2, output): U(-1/sqrt(2H), 1/sqrt(2H)).
    kl = 1.0 / ((2 * H) ** 0.5)
    wlab = u(ks[7], (2 * H, OUT), -kl, kl)
    blab = u(ks[8], (1, OUT), -kl, kl)

    return dict(embedding=embedding,
                wih_f=wih_f, whh_f=whh_f, b_f=b_f,
                wih_b=wih_b, whh_b=whh_b, b_b=b_b,
                wlab=wlab, blab=blab)


def reference_forward(token_ids, params):
    """Pure-JAX reference matching the PyTorch module's forward pass."""
    x = jnp.take(params["embedding"], token_ids, axis=0)
    x = jnp.transpose(x, (1, 0, 2)).astype(jnp.float32)      # (S, B, E)

    def step(carry, x_t, wih, whh, b):
        h, c = carry
        gates = x_t @ wih + h @ whh + b
        i = jax.nn.sigmoid(gates[:, 0 * H:1 * H])
        f = jax.nn.sigmoid(gates[:, 1 * H:2 * H])
        g = jnp.tanh(gates[:, 2 * H:3 * H])
        o = jax.nn.sigmoid(gates[:, 3 * H:4 * H])
        c = f * c + i * g
        h = o * jnp.tanh(c)
        return h, c

    zeros = (jnp.zeros((B, H), jnp.float32), jnp.zeros((B, H), jnp.float32))
    carry = zeros
    for t in range(S):
        carry = step(carry, x[t], params["wih_f"], params["whh_f"], params["b_f"])
    h_fwd = carry[0]
    h_bwd, _ = step(zeros, x[S - 1], params["wih_b"], params["whh_b"], params["b_b"])
    final = jnp.concatenate([h_fwd, h_bwd], axis=-1)
    return final @ params["wlab"] + params["blab"]


if __name__ == "__main__":
    key = jax.random.PRNGKey(0)
    pkey, dkey = jax.random.split(key)
    params = init_params(pkey)

    # input_sentences: (batch_size, sequence_length) integer token ids.
    token_ids = jax.random.randint(dkey, (B, S), 0, V, dtype=jnp.int32)

    # TODO(synk): nn.LSTM dropout is a no-op here (single layer / inference), so it is omitted.
    prepared = prepare_params(params)     # one-time (hoisted out of the forward path)
    jax.block_until_ready(prepared)

    logits = bilstm_forward(token_ids, prepared)
    jax.block_until_ready(logits)
    assert logits.shape == (B, OUT)

    ref = reference_forward(token_ids, params)
    assert jnp.allclose(logits, ref, atol=1e-4, rtol=1e-4), \
        float(jnp.max(jnp.abs(logits - ref)))

    print("KERNEL_OK")
</pallas_src>

<mosaic_0001>
module attributes {stable_mosaic.version = 11 : i64} {
  func.func @bilstm_kernel(%arg0: memref<2x8xi32, #tpu.memory_space<smem>>, %arg1: memref<160x256xf32, #tpu.memory_space<vmem>>, %arg2: memref<2x4xf32, #tpu.memory_space<vmem>>) attributes {dimension_semantics = [], scalar_prefetch = 0 : i64, scratch_operands = 0 : i64, tpu.core_type = #tpu.core_type<tc>} {
    %0 = tpu.iota {dimensions = array<i32: 1>} : vector<1x128xi32>
    %c64_i32 = arith.constant 64 : i32
    %1 = vector.broadcast %c64_i32 : i32 to vector<1x128xi32>
    %2 = arith.cmpi sge, %0, %1 : vector<1x128xi32>
    %c96_i32 = arith.constant 96 : i32
    %3 = vector.broadcast %c96_i32 : i32 to vector<1x128xi32>
    %4 = arith.cmpi slt, %0, %3 : vector<1x128xi32>
    %5 = arith.andi %2, %4 : vector<1x128xi1>
    %cst = arith.constant 1.000000e+00 : f32
    %cst_0 = arith.constant 5.000000e-01 : f32
    %6 = vector.broadcast %cst : f32 to vector<1x128xf32>
    %7 = vector.broadcast %cst_0 : f32 to vector<1x128xf32>
    %8 = arith.select %5, %6, %7 : vector<1x128xi1>, vector<1x128xf32>
    %cst_1 = arith.constant 0.000000e+00 : f32
    %cst_2 = arith.constant 5.000000e-01 : f32
    %9 = vector.broadcast %cst_1 : f32 to vector<1x128xf32>
    %10 = vector.broadcast %cst_2 : f32 to vector<1x128xf32>
    %11 = arith.select %5, %9, %10 : vector<1x128xi1>, vector<1x128xf32>
    %c56 = arith.constant 56 : index
    %c0 = arith.constant 0 : index
    %12 = vector.load %arg1[%c56, %c0] : memref<160x256xf32, #tpu.memory_space<vmem>>, vector<32x128xf32>
    %c0_3 = arith.constant 0 : index
    %c0_4 = arith.constant 0 : index
    %13 = memref.load %arg0[%c0_3, %c0_4] : memref<2x8xi32, #tpu.memory_space<smem>>
    %14 = arith.index_cast %13 : i32 to index
    %c0_5 = arith.constant 0 : index
    %15 = vector.load %arg1[%14, %c0_5] : memref<160x256xf32, #tpu.memory_space<vmem>>, vector<1x256xf32>
    %c1 = arith.constant 1 : index
    %c0_6 = arith.constant 0 : index
    %16 = memref.load %arg0[%c1, %c0_6] : memref<2x8xi32, #tpu.memory_space<smem>>
    %17 = arith.index_cast %16 : i32 to index
    %c0_7 = arith.constant 0 : index
    %18 = vector.load %arg1[%17, %c0_7] : memref<160x256xf32, #tpu.memory_space<vmem>>, vector<1x256xf32>
    %19 = tpu.concatenate %15, %18 in 0 : vector<1x256xf32>, vector<1x256xf32> -> vector<2x256xf32>
    %c0_8 = arith.constant 0 : index
    %c1_9 = arith.constant 1 : index
    %20 = memref.load %arg0[%c0_8, %c1_9] : memref<2x8xi32, #tpu.memory_space<smem>>
    %21 = arith.index_cast %20 : i32 to index
    %c0_10 = arith.constant 0 : index
    %22 = vector.load %arg1[%21, %c0_10] : memref<160x256xf32, #tpu.memory_space<vmem>>, vector<1x256xf32>
    %c1_11 = arith.constant 1 : index
    %c1_12 = arith.constant 1 : index
    %23 = memref.load %arg0[%c1_11, %c1_12] : memref<2x8xi32, #tpu.memory_space<smem>>
    %24 = arith.index_cast %23 : i32 to index
    %c0_13 = arith.constant 0 : index
    %25 = vector.load %arg1[%24, %c0_13] : memref<160x256xf32, #tpu.memory_space<vmem>>, vector<1x256xf32>
    %26 = tpu.concatenate %22, %25 in 0 : vector<1x256xf32>, vector<1x256xf32> -> vector<2x256xf32>
    %c0_14 = arith.constant 0 : index
    %c2 = arith.constant 2 : index
    %27 = memref.load %arg0[%c0_14, %c2] : memref<2x8xi32, #tpu.memory_space<smem>>
    %28 = arith.index_cast %27 : i32 to index
    %c0_15 = arith.constant 0 : index
    %29 = vector.load %arg1[%28, %c0_15] : memref<160x256xf32, #tpu.memory_space<vmem>>, vector<1x256xf32>
    %c1_16 = arith.constant 1 : index
    %c2_17 = arith.constant 2 : index
    %30 = memref.load %arg0[%c1_16, %c2_17] : memref<2x8xi32, #tpu.memory_space<smem>>
    %31 = arith.index_cast %30 : i32 to index
    %c0_18 = arith.constant 0 : index
    %32 = vector.load %arg1[%31, %c0_18] : memref<160x256xf32, #tpu.memory_space<vmem>>, vector<1x256xf32>
    %33 = tpu.concatenate %29, %32 in 0 : vector<1x256xf32>, vector<1x256xf32> -> vector<2x256xf32>
    %c0_19 = arith.constant 0 : index
    %c3 = arith.constant 3 : index
    %34 = memref.load %arg0[%c0_19, %c3] : memref<2x8xi32, #tpu.memory_space<smem>>
    %35 = arith.index_cast %34 : i32 to index
    %c0_20 = arith.constant 0 : index
    %36 = vector.load %arg1[%35, %c0_20] : memref<160x256xf32, #tpu.memory_space<vmem>>, vector<1x256xf32>
    %c1_21 = arith.constant 1 : index
    %c3_22 = arith.constant 3 : index
    %37 = memref.load %arg0[%c1_21, %c3_22] : memref<2x8xi32, #tpu.memory_space<smem>>
    %38 = arith.index_cast %37 : i32 to index
    %c0_23 = arith.constant 0 : index
    %39 = vector.load %arg1[%38, %c0_23] : memref<160x256xf32, #tpu.memory_space<vmem>>, vector<1x256xf32>
    %40 = tpu.concatenate %36, %39 in 0 : vector<1x256xf32>, vector<1x256xf32> -> vector<2x256xf32>
    %c0_24 = arith.constant 0 : index
    %c4 = arith.constant 4 : index
    %41 = memref.load %arg0[%c0_24, %c4] : memref<2x8xi32, #tpu.memory_space<smem>>
    %42 = arith.index_cast %41 : i32 to index
    %c0_25 = arith.constant 0 : index
    %43 = vector.load %arg1[%42, %c0_25] : memref<160x256xf32, #tpu.memory_space<vmem>>, vector<1x256xf32>
    %c1_26 = arith.constant 1 : index
    %c4_27 = arith.constant 4 : index
    %44 = memref.load %arg0[%c1_26, %c4_27] : memref<2x8xi32, #tpu.memory_space<smem>>
    %45 = arith.index_cast %44 : i32 to index
    %c0_28 = arith.constant 0 : index
    %46 = vector.load %arg1[%45, %c0_28] : memref<160x256xf32, #tpu.memory_space<vmem>>, vector<1x256xf32>
    %47 = tpu.concatenate %43, %46 in 0 : vector<1x256xf32>, vector<1x256xf32> -> vector<2x256xf32>
    %c0_29 = arith.constant 0 : index
    %c5 = arith.constant 5 : index
    %48 = memref.load %arg0[%c0_29, %c5] : memref<2x8xi32, #tpu.memory_space<smem>>
    %49 = arith.index_cast %48 : i32 to index
    %c0_30 = arith.constant 0 : index
    %50 = vector.load %arg1[%49, %c0_30] : memref<160x256xf32, #tpu.memory_space<vmem>>, vector<1x256xf32>
    %c1_31 = arith.constant 1 : index
    %c5_32 = arith.constant 5 : index
    %51 = memref.load %arg0[%c1_31, %c5_32] : memref<2x8xi32, #tpu.memory_space<smem>>
    %52 = arith.index_cast %51 : i32 to index
    %c0_33 = arith.constant 0 : index
    %53 = vector.load %arg1[%52, %c0_33] : memref<160x256xf32, #tpu.memory_space<vmem>>, vector<1x256xf32>
    %54 = tpu.concatenate %50, %53 in 0 : vector<1x256xf32>, vector<1x256xf32> -> vector<2x256xf32>
    %c0_34 = arith.constant 0 : index
    %c6 = arith.constant 6 : index
    %55 = memref.load %arg0[%c0_34, %c6] : memref<2x8xi32, #tpu.memory_space<smem>>
    %56 = arith.index_cast %55 : i32 to index
    %c0_35 = arith.constant 0 : index
    %57 = vector.load %arg1[%56, %c0_35] : memref<160x256xf32, #tpu.memory_space<vmem>>, vector<1x256xf32>
    %c1_36 = arith.constant 1 : index
    %c6_37 = arith.constant 6 : index
    %58 = memref.load %arg0[%c1_36, %c6_37] : memref<2x8xi32, #tpu.memory_space<smem>>
    %59 = arith.index_cast %58 : i32 to index
    %c0_38 = arith.constant 0 : index
    %60 = vector.load %arg1[%59, %c0_38] : memref<160x256xf32, #tpu.memory_space<vmem>>, vector<1x256xf32>
    %61 = tpu.concatenate %57, %60 in 0 : vector<1x256xf32>, vector<1x256xf32> -> vector<2x256xf32>
    %c0_39 = arith.constant 0 : index
    %c7 = arith.constant 7 : index
    %62 = memref.load %arg0[%c0_39, %c7] : memref<2x8xi32, #tpu.memory_space<smem>>
    %63 = arith.index_cast %62 : i32 to index
    %c0_40 = arith.constant 0 : index
    %64 = vector.load %arg1[%63, %c0_40] : memref<160x256xf32, #tpu.memory_space<vmem>>, vector<1x256xf32>
    %c1_41 = arith.constant 1 : index
    %c7_42 = arith.constant 7 : index
    %65 = memref.load %arg0[%c1_41, %c7_42] : memref<2x8xi32, #tpu.memory_space<smem>>
    %66 = arith.index_cast %65 : i32 to index
    %c0_43 = arith.constant 0 : index
    %67 = vector.load %arg1[%66, %c0_43] : memref<160x256xf32, #tpu.memory_space<vmem>>, vector<1x256xf32>
    %68 = tpu.concatenate %64, %67 in 0 : vector<1x256xf32>, vector<1x256xf32> -> vector<2x256xf32>
    %69 = vector.extract_strided_slice %19 {offsets = [0, 0], sizes = [2, 128], strides = [1, 1]} : vector<2x256xf32> to vector<2x128xf32>
    %70 = vector.extract_strided_slice %68 {offsets = [0, 128], sizes = [2, 128], strides = [1, 1]} : vector<2x256xf32> to vector<2x128xf32>
    %71 = tpu.concatenate %69, %70 in 0 : vector<2x128xf32>, vector<2x128xf32> -> vector<4x128xf32>
    %72 = vector.broadcast %8 : vector<1x128xf32> to vector<4x128xf32>
    %73 = arith.mulf %71, %72 : vector<4x128xf32>
    %74 = math.tanh %73 : vector<4x128xf32>
    %75 = vector.broadcast %8 : vector<1x128xf32> to vector<4x128xf32>
    %76 = arith.mulf %74, %75 : vector<4x128xf32>
    %77 = vector.broadcast %11 : vector<1x128xf32> to vector<4x128xf32>
    %78 = arith.addf %76, %77 : vector<4x128xf32>
    %79 = vector.extract_strided_slice %78 {offsets = [0, 0], sizes = [4, 32], strides = [1, 1]} : vector<4x128xf32> to vector<4x32xf32>
    %80 = vector.extract_strided_slice %78 {offsets = [0, 64], sizes = [4, 32], strides = [1, 1]} : vector<4x128xf32> to vector<4x32xf32>
    %81 = vector.extract_strided_slice %78 {offsets = [0, 96], sizes = [4, 32], strides = [1, 1]} : vector<4x128xf32> to vector<4x32xf32>
    %82 = arith.mulf %79, %80 : vector<4x32xf32>
    %83 = math.tanh %82 : vector<4x32xf32>
    %84 = arith.mulf %81, %83 : vector<4x32xf32>
    %85 = vector.extract_strided_slice %84 {offsets = [0, 0], sizes = [2, 32], strides = [1, 1]} : vector<4x32xf32> to vector<2x32xf32>
    %86 = vector.extract_strided_slice %82 {offsets = [0, 0], sizes = [2, 32], strides = [1, 1]} : vector<4x32xf32> to vector<2x32xf32>
    %87 = vector.extract_strided_slice %84 {offsets = [2, 0], sizes = [2, 32], strides = [1, 1]} : vector<4x32xf32> to vector<2x32xf32>
    %88 = vector.extract_strided_slice %26 {offsets = [0, 0], sizes = [2, 128], strides = [1, 1]} : vector<2x256xf32> to vector<2x128xf32>
    %cst_44 = arith.constant dense<0.000000e+00> : vector<2x128xf32>
    %89 = tpu.matmul %85, %12, %cst_44 {dimension_numbers = #tpu.dot_dimension_numbers<[1], [0], [0], [1], [0, 0, 1, 1], [], []>} : vector<2x32xf32>, vector<32x128xf32>, vector<2x128xf32> -> vector<2x128xf32>
    %90 = arith.addf %88, %89 : vector<2x128xf32>
    %91 = vector.broadcast %8 : vector<1x128xf32> to vector<2x128xf32>
    %92 = arith.mulf %90, %91 : vector<2x128xf32>
    %93 = math.tanh %92 : vector<2x128xf32>
    %94 = vector.broadcast %8 : vector<1x128xf32> to vector<2x128xf32>
    %95 = arith.mulf %93, %94 : vector<2x128xf32>
    %96 = vector.broadcast %11 : vector<1x128xf32> to vector<2x128xf32>
    %97 = arith.addf %95, %96 : vector<2x128xf32>
    %98 = vector.extract_strided_slice %97 {offsets = [0, 0], sizes = [2, 32], strides = [1, 1]} : vector<2x128xf32> to vector<2x32xf32>
    %99 = vector.extract_strided_slice %97 {offsets = [0, 32], sizes = [2, 32], strides = [1, 1]} : vector<2x128xf32> to vector<2x32xf32>
    %100 = vector.extract_strided_slice %97 {offsets = [0, 64], sizes = [2, 32], strides = [1, 1]} : vector<2x128xf32> to vector<2x32xf32>
    %101 = vector.extract_strided_slice %97 {offsets = [0, 96], sizes = [2, 32], strides = [1, 1]} : vector<2x128xf32> to vector<2x32xf32>
    %102 = arith.mulf %99, %86 : vector<2x32xf32>
    %103 = arith.mulf %98, %100 : vector<2x32xf32>
    %104 = arith.addf %102, %103 : vector<2x32xf32>
    %105 = math.tanh %104 : vector<2x32xf32>
    %106 = arith.mulf %101, %105 : vector<2x32xf32>
    %107 = vector.extract_strided_slice %33 {offsets = [0, 0], sizes = [2, 128], strides = [1, 1]} : vector<2x256xf32> to vector<2x128xf32>
    %cst_45 = arith.constant dense<0.000000e+00> : vector<2x128xf32>
    %108 = tpu.matmul %106, %12, %cst_45 {dimension_numbers = #tpu.dot_dimension_numbers<[1], [0], [0], [1], [0, 0, 1, 1], [], []>} : vector<2x32xf32>, vector<32x128xf32>, vector<2x128xf32> -> vector<2x128xf32>
    %109 = arith.addf %107, %108 : vector<2x128xf32>
    %110 = vector.broadcast %8 : vector<1x128xf32> to vector<2x128xf32>
    %111 = arith.mulf %109, %110 : vector<2x128xf32>
    %112 = math.tanh %111 : vector<2x128xf32>
    %113 = vector.broadcast %8 : vector<1x128xf32> to vector<2x128xf32>
    %114 = arith.mulf %112, %113 : vector<2x128xf32>
    %115 = vector.broadcast %11 : vector<1x128xf32> to vector<2x128xf32>
    %116 = arith.addf %114, %115 : vector<2x128xf32>
    %117 = vector.extract_strided_slice %116 {offsets = [0, 0], sizes = [2, 32], strides = [1, 1]} : vector<2x128xf32> to vector<2x32xf32>
    %118 = vector.extract_strided_slice %116 {offsets = [0, 32], sizes = [2, 32], strides = [1, 1]} : vector<2x128xf32> to vector<2x32xf32>
    %119 = vector.extract_strided_slice %116 {offsets = [0, 64], sizes = [2, 32], strides = [1, 1]} : vector<2x128xf32> to vector<2x32xf32>
    %120 = vector.extract_strided_slice %116 {offsets = [0, 96], sizes = [2, 32], strides = [1, 1]} : vector<2x128xf32> to vector<2x32xf32>
    %121 = arith.mulf %118, %104 : vector<2x32xf32>
    %122 = arith.mulf %117, %119 : vector<2x32xf32>
    %123 = arith.addf %121, %122 : vector<2x32xf32>
    %124 = math.tanh %123 : vector<2x32xf32>
    %125 = arith.mulf %120, %124 : vector<2x32xf32>
    %126 = vector.extract_strided_slice %40 {offsets = [0, 0], sizes = [2, 128], strides = [1, 1]} : vector<2x256xf32> to vector<2x128xf32>
    %cst_46 = arith.constant dense<0.000000e+00> : vector<2x128xf32>
    %127 = tpu.matmul %125, %12, %cst_46 {dimension_numbers = #tpu.dot_dimension_numbers<[1], [0], [0], [1], [0, 0, 1, 1], [], []>} : vector<2x32xf32>, vector<32x128xf32>, vector<2x128xf32> -> vector<2x128xf32>
    %128 = arith.addf %126, %127 : vector<2x128xf32>
    %129 = vector.broadcast %8 : vector<1x128xf32> to vector<2x128xf32>
    %130 = arith.mulf %128, %129 : vector<2x128xf32>
    %131 = math.tanh %130 : vector<2x128xf32>
    %132 = vector.broadcast %8 : vector<1x128xf32> to vector<2x128xf32>
    %133 = arith.mulf %131, %132 : vector<2x128xf32>
    %134 = vector.broadcast %11 : vector<1x128xf32> to vector<2x128xf32>
    %135 = arith.addf %133, %134 : vector<2x128xf32>
    %136 = vector.extract_strided_slice %135 {offsets = [0, 0], sizes = [2, 32], strides = [1, 1]} : vector<2x128xf32> to vector<2x32xf32>
    %137 = vector.extract_strided_slice %135 {offsets = [0, 32], sizes = [2, 32], strides = [1, 1]} : vector<2x128xf32> to vector<2x32xf32>
    %138 = vector.extract_strided_slice %135 {offsets = [0, 64], sizes = [2, 32], strides = [1, 1]} : vector<2x128xf32> to vector<2x32xf32>
    %139 = vector.extract_strided_slice %135 {offsets = [0, 96], sizes = [2, 32], strides = [1, 1]} : vector<2x128xf32> to vector<2x32xf32>
    %140 = arith.mulf %137, %123 : vector<2x32xf32>
    %141 = arith.mulf %136, %138 : vector<2x32xf32>
    %142 = arith.addf %140, %141 : vector<2x32xf32>
    %143 = math.tanh %142 : vector<2x32xf32>
    %144 = arith.mulf %139, %143 : vector<2x32xf32>
    %145 = vector.extract_strided_slice %47 {offsets = [0, 0], sizes = [2, 128], strides = [1, 1]} : vector<2x256xf32> to vector<2x128xf32>
    %cst_47 = arith.constant dense<0.000000e+00> : vector<2x128xf32>
    %146 = tpu.matmul %144, %12, %cst_47 {dimension_numbers = #tpu.dot_dimension_numbers<[1], [0], [0], [1], [0, 0, 1, 1], [], []>} : vector<2x32xf32>, vector<32x128xf32>, vector<2x128xf32> -> vector<2x128xf32>
    %147 = arith.addf %145, %146 : vector<2x128xf32>
    %148 = vector.broadcast %8 : vector<1x128xf32> to vector<2x128xf32>
    %149 = arith.mulf %147, %148 : vector<2x128xf32>
    %150 = math.tanh %149 : vector<2x128xf32>
    %151 = vector.broadcast %8 : vector<1x128xf32> to vector<2x128xf32>
    %152 = arith.mulf %150, %151 : vector<2x128xf32>
    %153 = vector.broadcast %11 : vector<1x128xf32> to vector<2x128xf32>
    %154 = arith.addf %152, %153 : vector<2x128xf32>
    %155 = vector.extract_strided_slice %154 {offsets = [0, 0], sizes = [2, 32], strides = [1, 1]} : vector<2x128xf32> to vector<2x32xf32>
    %156 = vector.extract_strided_slice %154 {offsets = [0, 32], sizes = [2, 32], strides = [1, 1]} : vector<2x128xf32> to vector<2x32xf32>
    %157 = vector.extract_strided_slice %154 {offsets = [0, 64], sizes = [2, 32], strides = [1, 1]} : vector<2x128xf32> to vector<2x32xf32>
    %158 = vector.extract_strided_slice %154 {offsets = [0, 96], sizes = [2, 32], strides = [1, 1]} : vector<2x128xf32> to vector<2x32xf32>
    %159 = arith.mulf %156, %142 : vector<2x32xf32>
    %160 = arith.mulf %155, %157 : vector<2x32xf32>
    %161 = arith.addf %159, %160 : vector<2x32xf32>
    %162 = math.tanh %161 : vector<2x32xf32>
    %163 = arith.mulf %158, %162 : vector<2x32xf32>
    %164 = vector.extract_strided_slice %54 {offsets = [0, 0], sizes = [2, 128], strides = [1, 1]} : vector<2x256xf32> to vector<2x128xf32>
    %cst_48 = arith.constant dense<0.000000e+00> : vector<2x128xf32>
    %165 = tpu.matmul %163, %12, %cst_48 {dimension_numbers = #tpu.dot_dimension_numbers<[1], [0], [0], [1], [0, 0, 1, 1], [], []>} : vector<2x32xf32>, vector<32x128xf32>, vector<2x128xf32> -> vector<2x128xf32>
    %166 = arith.addf %164, %165 : vector<2x128xf32>
    %167 = vector.broadcast %8 : vector<1x128xf32> to vector<2x128xf32>
    %168 = arith.mulf %166, %167 : vector<2x128xf32>
    %169 = math.tanh %168 : vector<2x128xf32>
    %170 = vector.broadcast %8 : vector<1x128xf32> to vector<2x128xf32>
    %171 = arith.mulf %169, %170 : vector<2x128xf32>
    %172 = vector.broadcast %11 : vector<1x128xf32> to vector<2x128xf32>
    %173 = arith.addf %171, %172 : vector<2x128xf32>
    %174 = vector.extract_strided_slice %173 {offsets = [0, 0], sizes = [2, 32], strides = [1, 1]} : vector<2x128xf32> to vector<2x32xf32>
    %175 = vector.extract_strided_slice %173 {offsets = [0, 32], sizes = [2, 32], strides = [1, 1]} : vector<2x128xf32> to vector<2x32xf32>
    %176 = vector.extract_strided_slice %173 {offsets = [0, 64], sizes = [2, 32], strides = [1, 1]} : vector<2x128xf32> to vector<2x32xf32>
    %177 = vector.extract_strided_slice %173 {offsets = [0, 96], sizes = [2, 32], strides = [1, 1]} : vector<2x128xf32> to vector<2x32xf32>
    %178 = arith.mulf %175, %161 : vector<2x32xf32>
    %179 = arith.mulf %174, %176 : vector<2x32xf32>
    %180 = arith.addf %178, %179 : vector<2x32xf32>
    %181 = math.tanh %180 : vector<2x32xf32>
    %182 = arith.mulf %177, %181 : vector<2x32xf32>
    %183 = vector.extract_strided_slice %61 {offsets = [0, 0], sizes = [2, 128], strides = [1, 1]} : vector<2x256xf32> to vector<2x128xf32>
    %cst_49 = arith.constant dense<0.000000e+00> : vector<2x128xf32>
    %184 = tpu.matmul %182, %12, %cst_49 {dimension_numbers = #tpu.dot_dimension_numbers<[1], [0], [0], [1], [0, 0, 1, 1], [], []>} : vector<2x32xf32>, vector<32x128xf32>, vector<2x128xf32> -> vector<2x128xf32>
    %185 = arith.addf %183, %184 : vector<2x128xf32>
    %186 = vector.broadcast %8 : vector<1x128xf32> to vector<2x128xf32>
    %187 = arith.mulf %185, %186 : vector<2x128xf32>
    %188 = math.tanh %187 : vector<2x128xf32>
    %189 = vector.broadcast %8 : vector<1x128xf32> to vector<2x128xf32>
    %190 = arith.mulf %188, %189 : vector<2x128xf32>
    %191 = vector.broadcast %11 : vector<1x128xf32> to vector<2x128xf32>
    %192 = arith.addf %190, %191 : vector<2x128xf32>
    %193 = vector.extract_strided_slice %192 {offsets = [0, 0], sizes = [2, 32], strides = [1, 1]} : vector<2x128xf32> to vector<2x32xf32>
    %194 = vector.extract_strided_slice %192 {offsets = [0, 32], sizes = [2, 32], strides = [1, 1]} : vector<2x128xf32> to vector<2x32xf32>
    %195 = vector.extract_strided_slice %192 {offsets = [0, 64], sizes = [2, 32], strides = [1, 1]} : vector<2x128xf32> to vector<2x32xf32>
    %196 = vector.extract_strided_slice %192 {offsets = [0, 96], sizes = [2, 32], strides = [1, 1]} : vector<2x128xf32> to vector<2x32xf32>
    %197 = arith.mulf %194, %180 : vector<2x32xf32>
    %198 = arith.mulf %193, %195 : vector<2x32xf32>
    %199 = arith.addf %197, %198 : vector<2x32xf32>
    %200 = math.tanh %199 : vector<2x32xf32>
    %201 = arith.mulf %196, %200 : vector<2x32xf32>
    %202 = vector.extract_strided_slice %68 {offsets = [0, 0], sizes = [2, 128], strides = [1, 1]} : vector<2x256xf32> to vector<2x128xf32>
    %cst_50 = arith.constant dense<0.000000e+00> : vector<2x128xf32>
    %203 = tpu.matmul %201, %12, %cst_50 {dimension_numbers = #tpu.dot_dimension_numbers<[1], [0], [0], [1], [0, 0, 1, 1], [], []>} : vector<2x32xf32>, vector<32x128xf32>, vector<2x128xf32> -> vector<2x128xf32>
    %204 = arith.addf %202, %203 : vector<2x128xf32>
    %205 = vector.broadcast %8 : vector<1x128xf32> to vector<2x128xf32>
    %206 = arith.mulf %204, %205 : vector<2x128xf32>
    %207 = math.tanh %206 : vector<2x128xf32>
    %208 = vector.broadcast %8 : vector<1x128xf32> to vector<2x128xf32>
    %209 = arith.mulf %207, %208 : vector<2x128xf32>
    %210 = vector.broadcast %11 : vector<1x128xf32> to vector<2x128xf32>
    %211 = arith.addf %209, %210 : vector<2x128xf32>
    %212 = vector.extract_strided_slice %211 {offsets = [0, 0], sizes = [2, 32], strides = [1, 1]} : vector<2x128xf32> to vector<2x32xf32>
    %213 = vector.extract_strided_slice %211 {offsets = [0, 32], sizes = [2, 32], strides = [1, 1]} : vector<2x128xf32> to vector<2x32xf32>
    %214 = vector.extract_strided_slice %211 {offsets = [0, 64], sizes = [2, 32], strides = [1, 1]} : vector<2x128xf32> to vector<2x32xf32>
    %215 = vector.extract_strided_slice %211 {offsets = [0, 96], sizes = [2, 32], strides = [1, 1]} : vector<2x128xf32> to vector<2x32xf32>
    %216 = arith.mulf %213, %199 : vector<2x32xf32>
    %217 = arith.mulf %212, %214 : vector<2x32xf32>
    %218 = arith.addf %216, %217 : vector<2x32xf32>
    %219 = math.tanh %218 : vector<2x32xf32>
    %220 = arith.mulf %215, %219 : vector<2x32xf32>
    %c88 = arith.constant 88 : index
    %c0_51 = arith.constant 0 : index
    %221 = vector.load %arg1[%c88, %c0_51] : memref<160x256xf32, #tpu.memory_space<vmem>>, vector<32x4xf32>
    %cst_52 = arith.constant dense<0.000000e+00> : vector<2x4xf32>
    %222 = tpu.matmul %220, %221, %cst_52 {dimension_numbers = #tpu.dot_dimension_numbers<[1], [0], [0], [1], [0, 0, 1, 1], [], []>} : vector<2x32xf32>, vector<32x4xf32>, vector<2x4xf32> -> vector<2x4xf32>
    %c120 = arith.constant 120 : index
    %c0_53 = arith.constant 0 : index
    %223 = vector.load %arg1[%c120, %c0_53] : memref<160x256xf32, #tpu.memory_space<vmem>>, vector<32x4xf32>
    %cst_54 = arith.constant dense<0.000000e+00> : vector<2x4xf32>
    %224 = tpu.matmul %87, %223, %cst_54 {dimension_numbers = #tpu.dot_dimension_numbers<[1], [0], [0], [1], [0, 0, 1, 1], [], []>} : vector<2x32xf32>, vector<32x4xf32>, vector<2x4xf32> -> vector<2x4xf32>
    %225 = arith.addf %222, %224 : vector<2x4xf32>
    %c152 = arith.constant 152 : index
    %c0_55 = arith.constant 0 : index
    %226 = vector.load %arg1[%c152, %c0_55] : memref<160x256xf32, #tpu.memory_space<vmem>>, vector<1x4xf32>
    %227 = vector.broadcast %226 : vector<1x4xf32> to vector<2x4xf32>
    %228 = arith.addf %225, %227 : vector<2x4xf32>
    %c0_56 = arith.constant 0 : index
    %c0_57 = arith.constant 0 : index
    %229 = vector.load %arg2[%c0_56, %c0_57] : memref<2x4xf32, #tpu.memory_space<vmem>>, vector<2x4xf32>
    tpu.vector_store %arg2[%c0_56, %c0_57], %228 {strides = array<i32>} : memref<2x4xf32, #tpu.memory_space<vmem>>, vector<2x4xf32>,
    return
  }
}

</mosaic_0001>

<llo_original>
// kernel: tpu_custom_call.1
$region0: #{tpu_custom_call.1}
  #allocation0 [shape = 'u32[]', space=smem, size = 0x4, offset = 0x4, fixed_abs, tag = 'smem constant byte address 0x4 - core index']
  #allocation1 [shape = 'u32[72,128]{1,0:T(1,128)}', space=vmem, size = 0x9000, scoped, tag = 'internal scratch']
  %s0 = inlined_call_operand.hbm [shape: s32[2,8], index: 0, kind: input, shape index: {}]
  %s1 = inlined_call_operand.hbm [shape: f32[160,256], index: 1, kind: input, shape index: {}]
  %s2 = inlined_call_operand.hbm [shape: f32[2,4], index: 2, kind: output, shape index: {}]
  %s3 = sld [smem:[#allocation0]]
  $region26: #{tpu_custom_call.1} parent=0
    _
  %s5 = ssub.s32 1, %s3
  %s6 = scalar_select 0, %s5, %s3
  $region1: #{tpu_custom_call.1} parent=0
    #allocation2 [shape = 'u8[1024]{0}', space=smem, size = 0x400, scoped, tag = 'input window, operand 0, single buffered']
    #allocation3 [shape = 's32[1]{0}', space=sflag, size = 0x4, scoped, tag = 'scoped memory for tpu_custom_call.1']
    #allocation4 [shape = 's32[1]{0}', space=sflag, size = 0x4, scoped, tag = 'scoped memory for tpu_custom_call.1']
    #allocation5 [shape = 's32[1]{0}', space=sflag, size = 0x4, scoped, tag = 'scoped memory for tpu_custom_call.1']
    #allocation6 [shape = 'u8[163840]{0}', space=vmem, size = 0x28000, scoped, tag = 'input window, operand 1, single buffered']
    #allocation7 [shape = 'u8[1024]{0}', space=vmem, size = 0x400, scoped, tag = 'output window, operand 0, single buffered']
    %7 = vsyncpa [#allocation5], 0
    %8 = vsyncpa [#allocation3], 0
    %9 = vsyncpa [#allocation4], 0
    // Predicated region
    $region2: #{tpu_custom_call.1} parent=1 // pred_check
      _
    $region3: #{tpu_custom_call.1} parent=1 // pred_check_branch
      %11 = sbr.rel (0) target = $region5
    $region4: #{tpu_custom_call.1} parent=1 // pred_region
      %13 = vsyncadd [#allocation5], 0
      %s15 = sshll.u32 %s0, 4
      %s16 = int_to_ptr.hbm [resolvable:$true] %s15
      %18 = dma.hbm_to_smem %s16, 32, [#allocation2], [#allocation5]
    $region5: #{tpu_custom_call.1} parent=1 // pred_fallthru
      _
    // Predicated region
    $region6: #{tpu_custom_call.1} parent=1 // pred_check
      _
    $region7: #{tpu_custom_call.1} parent=1 // pred_check_branch
      %20 = sbr.rel (0) target = $region9
    $region8: #{tpu_custom_call.1} parent=1 // pred_region
      %22 = vsyncadd [#allocation3], 0
      %s23 = sshll.u32 %s1, 4
      %s24 = int_to_ptr.hbm [resolvable:$true] %s23
      %s25 = sshll.u32 [#allocation6], 4
      %s26 = int_to_ptr.vmem [resolvable:$true] %s25
      %31 = dma.hbm_to_vmem [thread:$0]  %s24, 5120, %s26, [#allocation3], 256, 256, 16
    $region9: #{tpu_custom_call.1} parent=1 // pred_fallthru
      _
    // Predicated region
    $region10: #{tpu_custom_call.1} parent=1 // pred_check
      _
    $region11: #{tpu_custom_call.1} parent=1 // pred_check_branch
      %33 = sbr.rel (0) target = $region13
    $region12: #{tpu_custom_call.1} parent=1 // pred_region
      %35 = dma.done [#allocation5], 32
    $region13: #{tpu_custom_call.1} parent=1 // pred_fallthru
      _
    // Predicated region
    $region14: #{tpu_custom_call.1} parent=1 // pred_check
      _
    $region15: #{tpu_custom_call.1} parent=1 // pred_check_branch
      %37 = sbr.rel (0) target = $region17
    $region16: #{tpu_custom_call.1} parent=1 // pred_region
      %39 = dma.done [#allocation3], 5120
    $region17: #{tpu_custom_call.1} parent=1 // pred_fallthru
      _
    %40 = sfence
    %v41 = vlaneseq
    %v42 = vand.u32 %v41, 127
    %vm43 = vcmp.ge.s32.totalorder %v42, 64
    %vm44 = vcmp.lt.s32.totalorder %v42, 96
    %vm45 = vmand %vm43, %vm44
    %v46 = vsel %vm45, 1.0, 0.5
    %v47 = vsel %vm45, 0.0, 0.5
    %v48 = vld [vmem:[#allocation6 + $0x70] sm:$0xff]
    %v49 = vld [vmem:[#allocation6 + $0x80] sm:$0xff]
    %v50 = vld [vmem:[#allocation6 + $0x90] sm:$0xff]
    %v51 = vld [vmem:[#allocation6 + $0xa0] sm:$0xff]
    %s52 = sld [smem:[#allocation2]]
    %s53 = sshra.s32 %s52, 3
    %s54 = sand.u32 %s52, 7
    %s55 = sshra.s32 %s52, 3
    %s56 = sand.u32 %s52, 7
    %s57 = smul.u32 %s53, 2
    %s58 = smul.u32 %s57, 8
    %s59 = sadd.s32 %s58, %s56
    %s60 = scalar_lea.vmem [#allocation6], %s59
    %v61 = vld [vmem:[%s60] ss:$8 sm:$0x3]
    %s62 = sld [smem:[#allocation2 + $0x80]]
    %s63 = sshra.s32 %s62, 3
    %s64 = sand.u32 %s62, 7
    %s65 = sshra.s32 %s62, 3
    %s66 = sand.u32 %s62, 7
    %s67 = smul.u32 %s63, 2
    %s68 = smul.u32 %s67, 8
    %s69 = sadd.s32 %s68, %s66
    %s70 = scalar_lea.vmem [#allocation6], %s69
    %v71 = vld [vmem:[%s70] ss:$8 sm:$0x3]
    %v73 = vperm.slane %v61, 0
    %v76 = vperm.slane %v71, 0
    %vm78 = vcmask 1040384
    %v79 = vsel %vm78, %v73, %v76
    %s80 = sld [smem:[#allocation2 + $0x1]]
    %s81 = sshra.s32 %s80, 3
    %s82 = sand.u32 %s80, 7
    %s83 = sshra.s32 %s80, 3
    %s84 = sand.u32 %s80, 7
    %s85 = smul.u32 %s81, 2
    %s86 = smul.u32 %s85, 8
    %s87 = sadd.s32 %s86, %s84
    %s88 = scalar_lea.vmem [#allocation6], %s87
    %v89 = vld [vmem:[%s88] ss:$8 sm:$0x3]
    %s90 = sld [smem:[#allocation2 + $0x81]]
    %s91 = sshra.s32 %s90, 3
    %s92 = sand.u32 %s90, 7
    %s93 = sshra.s32 %s90, 3
    %s94 = sand.u32 %s90, 7
    %s95 = smul.u32 %s91, 2
    %s96 = smul.u32 %s95, 8
    %s97 = sadd.s32 %s96, %s94
    %s98 = scalar_lea.vmem [#allocation6], %s97
    %v99 = vld [vmem:[%s98] ss:$8 sm:$0x3]
    %v101 = vperm.slane %v89, 0
    %v104 = vperm.slane %v99, 0
    %v106 = vsel %vm78, %v101, %v104
    %s107 = sld [smem:[#allocation2 + $0x2]]
    %s108 = sshra.s32 %s107, 3
    %s109 = sand.u32 %s107, 7
    %s110 = sshra.s32 %s107, 3
    %s111 = sand.u32 %s107, 7
    %s112 = smul.u32 %s108, 2
    %s113 = smul.u32 %s112, 8
    %s114 = sadd.s32 %s113, %s111
    %s115 = scalar_lea.vmem [#allocation6], %s114
    %v116 = vld [vmem:[%s115] ss:$8 sm:$0x3]
    %s117 = sld [smem:[#allocation2 + $0x82]]
    %s118 = sshra.s32 %s117, 3
    %s119 = sand.u32 %s117, 7
    %s120 = sshra.s32 %s117, 3
    %s121 = sand.u32 %s117, 7
    %s122 = smul.u32 %s118, 2
    %s123 = smul.u32 %s122, 8
    %s124 = sadd.s32 %s123, %s121
    %s125 = scalar_lea.vmem [#allocation6], %s124
    %v126 = vld [vmem:[%s125] ss:$8 sm:$0x3]
    %v128 = vperm.slane %v116, 0
    %v131 = vperm.slane %v126, 0
    %v133 = vsel %vm78, %v128, %v131
    %s134 = sld [smem:[#allocation2 + $0x3]]
    %s135 = sshra.s32 %s134, 3
    %s136 = sand.u32 %s134, 7
    %s137 = sshra.s32 %s134, 3
    %s138 = sand.u32 %s134, 7
    %s139 = smul.u32 %s135, 2
    %s140 = smul.u32 %s139, 8
    %s141 = sadd.s32 %s140, %s138
    %s142 = scalar_lea.vmem [#allocation6], %s141
    %v143 = vld [vmem:[%s142] ss:$8 sm:$0x3]
    %s144 = sld [smem:[#allocation2 + $0x83]]
    %s145 = sshra.s32 %s144, 3
    %s146 = sand.u32 %s144, 7
    %s147 = sshra.s32 %s144, 3
    %s148 = sand.u32 %s144, 7
    %s149 = smul.u32 %s145, 2
    %s150 = smul.u32 %s149, 8
    %s151 = sadd.s32 %s150, %s148
    %s152 = scalar_lea.vmem [#allocation6], %s151
    %v153 = vld [vmem:[%s152] ss:$8 sm:$0x3]
    %v155 = vperm.slane %v143, 0
    %v158 = vperm.slane %v153, 0
    %v160 = vsel %vm78, %v155, %v158
    %s161 = sld [smem:[#allocation2 + $0x4]]
    %s162 = sshra.s32 %s161, 3
    %s163 = sand.u32 %s161, 7
    %s164 = sshra.s32 %s161, 3
    %s165 = sand.u32 %s161, 7
    %s166 = smul.u32 %s162, 2
    %s167 = smul.u32 %s166, 8
    %s168 = sadd.s32 %s167, %s165
    %s169 = scalar_lea.vmem [#allocation6], %s168
    %v170 = vld [vmem:[%s169] ss:$8 sm:$0x3]
    %s171 = sld [smem:[#allocation2 + $0x84]]
    %s172 = sshra.s32 %s171, 3
    %s173 = sand.u32 %s171, 7
    %s174 = sshra.s32 %s171, 3
    %s175 = sand.u32 %s171, 7
    %s176 = smul.u32 %s172, 2
    %s177 = smul.u32 %s176, 8
    %s178 = sadd.s32 %s177, %s175
    %s179 = scalar_lea.vmem [#allocation6], %s178
    %v180 = vld [vmem:[%s179] ss:$8 sm:$0x3]
    %v182 = vperm.slane %v170, 0
    %v185 = vperm.slane %v180, 0
    %v187 = vsel %vm78, %v182, %v185
    %s188 = sld [smem:[#allocation2 + $0x5]]
    %s189 = sshra.s32 %s188, 3
    %s190 = sand.u32 %s188, 7
    %s191 = sshra.s32 %s188, 3
    %s192 = sand.u32 %s188, 7
    %s193 = smul.u32 %s189, 2
    %s194 = smul.u32 %s193, 8
    %s195 = sadd.s32 %s194, %s192
    %s196 = scalar_lea.vmem [#allocation6], %s195
    %v197 = vld [vmem:[%s196] ss:$8 sm:$0x3]
    %s198 = sld [smem:[#allocation2 + $0x85]]
    %s199 = sshra.s32 %s198, 3
    %s200 = sand.u32 %s198, 7
    %s201 = sshra.s32 %s198, 3
    %s202 = sand.u32 %s198, 7
    %s203 = smul.u32 %s199, 2
    %s204 = smul.u32 %s203, 8
    %s205 = sadd.s32 %s204, %s202
    %s206 = scalar_lea.vmem [#allocation6], %s205
    %v207 = vld [vmem:[%s206] ss:$8 sm:$0x3]
    %v209 = vperm.slane %v197, 0
    %v212 = vperm.slane %v207, 0
    %v214 = vsel %vm78, %v209, %v212
    %s215 = sld [smem:[#allocation2 + $0x6]]
    %s216 = sshra.s32 %s215, 3
    %s217 = sand.u32 %s215, 7
    %s218 = sshra.s32 %s215, 3
    %s219 = sand.u32 %s215, 7
    %s220 = smul.u32 %s216, 2
    %s221 = smul.u32 %s220, 8
    %s222 = sadd.s32 %s221, %s219
    %s223 = scalar_lea.vmem [#allocation6], %s222
    %v224 = vld [vmem:[%s223] ss:$8 sm:$0x3]
    %s225 = sld [smem:[#allocation2 + $0x86]]
    %s226 = sshra.s32 %s225, 3
    %s227 = sand.u32 %s225, 7
    %s228 = sshra.s32 %s225, 3
    %s229 = sand.u32 %s225, 7
    %s230 = smul.u32 %s226, 2
    %s231 = smul.u32 %s230, 8
    %s232 = sadd.s32 %s231, %s229
    %s233 = scalar_lea.vmem [#allocation6], %s232
    %v234 = vld [vmem:[%s233] ss:$8 sm:$0x3]
    %v236 = vperm.slane %v224, 0
    %v239 = vperm.slane %v234, 0
    %v241 = vsel %vm78, %v236, %v239
    %s242 = sld [smem:[#allocation2 + $0x7]]
    %s243 = sshra.s32 %s242, 3
    %s244 = sand.u32 %s242, 7
    %s245 = sshra.s32 %s242, 3
    %s246 = sand.u32 %s242, 7
    %s247 = smul.u32 %s243, 2
    %s248 = smul.u32 %s247, 8
    %s249 = sadd.s32 %s248, %s246
    %s250 = scalar_lea.vmem [#allocation6], %s249
    %v251 = vld [vmem:[%s250] ss:$8 sm:$0x3]
    %s252 = sld [smem:[#allocation2 + $0x87]]
    %s253 = sshra.s32 %s252, 3
    %s254 = sand.u32 %s252, 7
    %s255 = sshra.s32 %s252, 3
    %s256 = sand.u32 %s252, 7
    %s257 = smul.u32 %s253, 2
    %s258 = smul.u32 %s257, 8
    %s259 = sadd.s32 %s258, %s256
    %s260 = scalar_lea.vmem [#allocation6], %s259
    %v261 = vld [vmem:[%s260] ss:$8 sm:$0x3]
    %v263 = vperm.slane %v251, 0
    %v264 = vperm.slane %v251, 1
    %v268 = vperm.slane %v261, 0
    %v269 = vperm.slane %v261, 1
    %v272 = vsel %vm78, %v263, %v268
    %v273 = vsel %vm78, %v264, %v269
    %v275 = vrot.slane %v273, 6
    %vm277 = vcmask 1041408
    %v278 = vsel %vm277, %v79, %v275
    %v279 = vmul.f32 %v278, %v46
    %v280 = vtanh.pop %v279
    %v281 = vmul.f32 %v280, %v46
    %v282 = vadd.f32 %v281, %v47
    %284 = vrot.lane.b32.xlu0 %v282, 64
    %v285 = vpop.permute.xlu0 %284
    %v287 = vmul.f32 %v282, %v285
    %v288 = vtanh.pop %v287
    %290 = vrot.lane.b32.xlu0 %v288, 96
    %v291 = vpop.permute.xlu0 %290
    %v293 = vmul.f32 %v282, %v291
    %295 = vrot.lane.b32.xlu0 %v293, 32
    %v296 = vpop.permute.xlu0 %295
    %vm297 = vcmask 261120
    %v298 = vsel %vm297, %v296, 0
    %300 = vmatpush.msra.mxu0 0.0
    %301 = vmatpush.msra.mxu0 0.0
    %302 = vmatpush.msra.mxu0 0.0
    %303 = vmatpush.msra.mxu0 0.0
    %304 = vmatpush.msra.mxu0 0.0
    %305 = vmatpush.msra.mxu0 0.0
    %306 = vmatpush.msra.mxu0 0.0
    %307 = vmatpush.msra.mxu0 0.0
    %308 = vmatpush.msra.mxu0 0.0
    %309 = vmatpush.msra.mxu0 0.0
    %310 = vmatpush.msra.mxu0 0.0
    %311 = vmatpush.msra.mxu0 0.0
    %312 = vmatpush.msra.mxu0 %v51
    %313 = vmatpush.msra.mxu0 %v50
    %314 = vmatpush.msra.mxu0 %v49
    %315 = vmatpush.msra.mxu0 %v48
    %316 = vmatmul.f32.gmra.mxu0 %v298
    %v317 = vpop.f32.mrf.mxu0
    %v318 = vadd.f32 0.0, %v317
    %319 = vdwg.mxu0
    %v320 = vadd.f32 %v106, %v318
    %v321 = vmul.f32 %v320, %v46
    %v322 = vtanh.pop %v321
    %v323 = vmul.f32 %v322, %v46
    %v324 = vadd.f32 %v323, %v47
    %326 = vrot.lane.b32.xlu0 %v287, 32
    %v327 = vpop.permute.xlu0 %326
    %v329 = vmul.f32 %v324, %v327
    %331 = vrot.lane.b32.xlu0 %v324, 64
    %v332 = vpop.permute.xlu0 %331
    %v334 = vmul.f32 %v324, %v332
    %336 = vrot.lane.b32.xlu0 %v334, 32
    %v337 = vpop.permute.xlu0 %336
    %v339 = vadd.f32 %v329, %v337
    %v340 = vtanh.pop %v339
    %342 = vrot.lane.b32.xlu0 %v340, 64
    %v343 = vpop.permute.xlu0 %342
    %v345 = vmul.f32 %v324, %v343
    %347 = vrot.lane.b32.xlu0 %v345, 32
    %v348 = vpop.permute.xlu0 %347
    %v349 = vsel %vm297, %v348, 0
    %351 = vmatpush.msra.mxu0 0.0
    %352 = vmatpush.msra.mxu0 0.0
    %353 = vmatpush.msra.mxu0 0.0
    %354 = vmatpush.msra.mxu0 0.0
    %355 = vmatpush.msra.mxu0 0.0
    %356 = vmatpush.msra.mxu0 0.0
    %357 = vmatpush.msra.mxu0 0.0
    %358 = vmatpush.msra.mxu0 0.0
    %359 = vmatpush.msra.mxu0 0.0
    %360 = vmatpush.msra.mxu0 0.0
    %361 = vmatpush.msra.mxu0 0.0
    %362 = vmatpush.msra.mxu0 0.0
    %363 = vmatpush.msra.mxu0 %v51
    %364 = vmatpush.msra.mxu0 %v50
    %365 = vmatpush.msra.mxu0 %v49
    %366 = vmatpush.msra.mxu0 %v48
    %367 = vmatmul.f32.gmra.mxu0 %v349
    %v368 = vpop.f32.mrf.mxu0
    %v369 = vadd.f32 0.0, %v368
    %370 = vdwg.mxu0
    %v371 = vadd.f32 %v133, %v369
    %v372 = vmul.f32 %v371, %v46
    %v373 = vtanh.pop %v372
    %v374 = vmul.f32 %v373, %v46
    %v375 = vadd.f32 %v374, %v47
    %v376 = vmul.f32 %v375, %v339
    %378 = vrot.lane.b32.xlu0 %v375, 64
    %v379 = vpop.permute.xlu0 %378
    %v381 = vmul.f32 %v375, %v379
    %383 = vrot.lane.b32.xlu0 %v381, 32
    %v384 = vpop.permute.xlu0 %383
    %v386 = vadd.f32 %v376, %v384
    %v387 = vtanh.pop %v386
    %389 = vrot.lane.b32.xlu0 %v387, 64
    %v390 = vpop.permute.xlu0 %389
    %v392 = vmul.f32 %v375, %v390
    %394 = vrot.lane.b32.xlu0 %v392, 32
    %v395 = vpop.permute.xlu0 %394
    %v396 = vsel %vm297, %v395, 0
    %398 = vmatpush.msra.mxu0 0.0
    %399 = vmatpush.msra.mxu0 0.0
    %400 = vmatpush.msra.mxu0 0.0
    %401 = vmatpush.msra.mxu0 0.0
    %402 = vmatpush.msra.mxu0 0.0
    %403 = vmatpush.msra.mxu0 0.0
    %404 = vmatpush.msra.mxu0 0.0
    %405 = vmatpush.msra.mxu0 0.0
    %406 = vmatpush.msra.mxu0 0.0
    %407 = vmatpush.msra.mxu0 0.0
    %408 = vmatpush.msra.mxu0 0.0
    %409 = vmatpush.msra.mxu0 0.0
    %410 = vmatpush.msra.mxu0 %v51
    %411 = vmatpush.msra.mxu0 %v50
    %412 = vmatpush.msra.mxu0 %v49
    %413 = vmatpush.msra.mxu0 %v48
    %414 = vmatmul.f32.gmra.mxu0 %v396
    %v415 = vpop.f32.mrf.mxu0
    %v416 = vadd.f32 0.0, %v415
    %417 = vdwg.mxu0
    %v418 = vadd.f32 %v160, %v416
    %v419 = vmul.f32 %v418, %v46
    %v420 = vtanh.pop %v419
    %v421 = vmul.f32 %v420, %v46
    %v422 = vadd.f32 %v421, %v47
    %v423 = vmul.f32 %v422, %v386
    %425 = vrot.lane.b32.xlu0 %v422, 64
    %v426 = vpop.permute.xlu0 %425
    %v428 = vmul.f32 %v422, %v426
    %430 = vrot.lane.b32.xlu0 %v428, 32
    %v431 = vpop.permute.xlu0 %430
    %v433 = vadd.f32 %v423, %v431
    %v434 = vtanh.pop %v433
    %436 = vrot.lane.b32.xlu0 %v434, 64
    %v437 = vpop.permute.xlu0 %436
    %v439 = vmul.f32 %v422, %v437
    %441 = vrot.lane.b32.xlu0 %v439, 32
    %v442 = vpop.permute.xlu0 %441
    %v443 = vsel %vm297, %v442, 0
    %445 = vmatpush.msra.mxu0 0.0
    %446 = vmatpush.msra.mxu0 0.0
    %447 = vmatpush.msra.mxu0 0.0
    %448 = vmatpush.msra.mxu0 0.0
    %449 = vmatpush.msra.mxu0 0.0
    %450 = vmatpush.msra.mxu0 0.0
    %451 = vmatpush.msra.mxu0 0.0
    %452 = vmatpush.msra.mxu0 0.0
    %453 = vmatpush.msra.mxu0 0.0
    %454 = vmatpush.msra.mxu0 0.0
    %455 = vmatpush.msra.mxu0 0.0
    %456 = vmatpush.msra.mxu0 0.0
    %457 = vmatpush.msra.mxu0 %v51
    %458 = vmatpush.msra.mxu0 %v50
    %459 = vmatpush.msra.mxu0 %v49
    %460 = vmatpush.msra.mxu0 %v48
    %461 = vmatmul.f32.gmra.mxu0 %v443
    %v462 = vpop.f32.mrf.mxu0
    %v463 = vadd.f32 0.0, %v462
    %464 = vdwg.mxu0
    %v465 = vadd.f32 %v187, %v463
    %v466 = vmul.f32 %v465, %v46
    %v467 = vtanh.pop %v466
    %v468 = vmul.f32 %v467, %v46
    %v469 = vadd.f32 %v468, %v47
    %v470 = vmul.f32 %v469, %v433
    %472 = vrot.lane.b32.xlu0 %v469, 64
    %v473 = vpop.permute.xlu0 %472
    %v475 = vmul.f32 %v469, %v473
    %477 = vrot.lane.b32.xlu0 %v475, 32
    %v478 = vpop.permute.xlu0 %477
    %v480 = vadd.f32 %v470, %v478
    %v481 = vtanh.pop %v480
    %483 = vrot.lane.b32.xlu0 %v481, 64
    %v484 = vpop.permute.xlu0 %483
    %v486 = vmul.f32 %v469, %v484
    %488 = vrot.lane.b32.xlu0 %v486, 32
    %v489 = vpop.permute.xlu0 %488
    %v490 = vsel %vm297, %v489, 0
    %492 = vmatpush.msra.mxu0 0.0
    %493 = vmatpush.msra.mxu0 0.0
    %494 = vmatpush.msra.mxu0 0.0
    %495 = vmatpush.msra.mxu0 0.0
    %496 = vmatpush.msra.mxu0 0.0
    %497 = vmatpush.msra.mxu0 0.0
    %498 = vmatpush.msra.mxu0 0.0
    %499 = vmatpush.msra.mxu0 0.0
    %500 = vmatpush.msra.mxu0 0.0
    %501 = vmatpush.msra.mxu0 0.0
    %502 = vmatpush.msra.mxu0 0.0
    %503 = vmatpush.msra.mxu0 0.0
    %504 = vmatpush.msra.mxu0 %v51
    %505 = vmatpush.msra.mxu0 %v50
    %506 = vmatpush.msra.mxu0 %v49
    %507 = vmatpush.msra.mxu0 %v48
    %508 = vmatmul.f32.gmra.mxu0 %v490
    %v509 = vpop.f32.mrf.mxu0
    %v510 = vadd.f32 0.0, %v509
    %511 = vdwg.mxu0
    %v512 = vadd.f32 %v214, %v510
    %v513 = vmul.f32 %v512, %v46
    %v514 = vtanh.pop %v513
    %v515 = vmul.f32 %v514, %v46
    %v516 = vadd.f32 %v515, %v47
    %v517 = vmul.f32 %v516, %v480
    %519 = vrot.lane.b32.xlu0 %v516, 64
    %v520 = vpop.permute.xlu0 %519
    %v522 = vmul.f32 %v516, %v520
    %524 = vrot.lane.b32.xlu0 %v522, 32
    %v525 = vpop.permute.xlu0 %524
    %v527 = vadd.f32 %v517, %v525
    %v528 = vtanh.pop %v527
    %530 = vrot.lane.b32.xlu0 %v528, 64
    %v531 = vpop.permute.xlu0 %530
    %v533 = vmul.f32 %v516, %v531
    %535 = vrot.lane.b32.xlu0 %v533, 32
    %v536 = vpop.permute.xlu0 %535
    %v537 = vsel %vm297, %v536, 0
    %539 = vmatpush.msra.mxu0 0.0
    %540 = vmatpush.msra.mxu0 0.0
    %541 = vmatpush.msra.mxu0 0.0
    %542 = vmatpush.msra.mxu0 0.0
    %543 = vmatpush.msra.mxu0 0.0
    %544 = vmatpush.msra.mxu0 0.0
    %545 = vmatpush.msra.mxu0 0.0
    %546 = vmatpush.msra.mxu0 0.0
    %547 = vmatpush.msra.mxu0 0.0
    %548 = vmatpush.msra.mxu0 0.0
    %549 = vmatpush.msra.mxu0 0.0
    %550 = vmatpush.msra.mxu0 0.0
    %551 = vmatpush.msra.mxu0 %v51
    %552 = vmatpush.msra.mxu0 %v50
    %553 = vmatpush.msra.mxu0 %v49
    %554 = vmatpush.msra.mxu0 %v48
    %555 = vmatmul.f32.gmra.mxu0 %v537
    %v556 = vpop.f32.mrf.mxu0
    %v557 = vadd.f32 0.0, %v556
    %558 = vdwg.mxu0
    %v559 = vadd.f32 %v241, %v557
    %v560 = vmul.f32 %v559, %v46
    %v561 = vtanh.pop %v560
    %v562 = vmul.f32 %v561, %v46
    %v563 = vadd.f32 %v562, %v47
    %v564 = vmul.f32 %v563, %v527
    %566 = vrot.lane.b32.xlu0 %v563, 64
    %v567 = vpop.permute.xlu0 %566
    %v569 = vmul.f32 %v563, %v567
    %571 = vrot.lane.b32.xlu0 %v569, 32
    %v572 = vpop.permute.xlu0 %571
    %v574 = vadd.f32 %v564, %v572
    %v575 = vtanh.pop %v574
    %577 = vrot.lane.b32.xlu0 %v575, 64
    %v578 = vpop.permute.xlu0 %577
    %v580 = vmul.f32 %v563, %v578
    %582 = vrot.lane.b32.xlu0 %v580, 32
    %v583 = vpop.permute.xlu0 %582
    %v584 = vsel %vm297, %v583, 0
    %586 = vmatpush.msra.mxu0 0.0
    %587 = vmatpush.msra.mxu0 0.0
    %588 = vmatpush.msra.mxu0 0.0
    %589 = vmatpush.msra.mxu0 0.0
    %590 = vmatpush.msra.mxu0 0.0
    %591 = vmatpush.msra.mxu0 0.0
    %592 = vmatpush.msra.mxu0 0.0
    %593 = vmatpush.msra.mxu0 0.0
    %594 = vmatpush.msra.mxu0 0.0
    %595 = vmatpush.msra.mxu0 0.0
    %596 = vmatpush.msra.mxu0 0.0
    %597 = vmatpush.msra.mxu0 0.0
    %598 = vmatpush.msra.mxu0 %v51
    %599 = vmatpush.msra.mxu0 %v50
    %600 = vmatpush.msra.mxu0 %v49
    %601 = vmatpush.msra.mxu0 %v48
    %602 = vmatmul.f32.gmra.mxu0 %v584
    %v603 = vpop.f32.mrf.mxu0
    %v604 = vadd.f32 0.0, %v603
    %605 = vdwg.mxu0
    %v606 = vadd.f32 %v272, %v604
    %v607 = vmul.f32 %v606, %v46
    %v608 = vtanh.pop %v607
    %v609 = vmul.f32 %v608, %v46
    %v610 = vadd.f32 %v609, %v47
    %v611 = vmul.f32 %v610, %v574
    %613 = vrot.lane.b32.xlu0 %v610, 64
    %v614 = vpop.permute.xlu0 %613
    %v616 = vmul.f32 %v610, %v614
    %618 = vrot.lane.b32.xlu0 %v616, 32
    %v619 = vpop.permute.xlu0 %618
    %v621 = vadd.f32 %v611, %v619
    %v622 = vtanh.pop %v621
    %624 = vrot.lane.b32.xlu0 %v622, 64
    %v625 = vpop.permute.xlu0 %624
    %v627 = vmul.f32 %v610, %v625
    %v628 = vld [vmem:[#allocation6 + $0xb0] sm:$0xff]
    %v629 = vld [vmem:[#allocation6 + $0xc0] sm:$0xff]
    %v630 = vld [vmem:[#allocation6 + $0xd0] sm:$0xff]
    %v631 = vld [vmem:[#allocation6 + $0xe0] sm:$0xff]
    %v632 = vld [vmem:[#allocation6 + $0xf0] sm:$0xff]
    %v633 = vld [vmem:[#allocation6 + $0x100] sm:$0xff]
    %v634 = vld [vmem:[#allocation6 + $0x110] sm:$0xff]
    %v635 = vld [vmem:[#allocation6 + $0x120] sm:$0xff]
    %v636 = vrot.slane %v293, 2
    %637 = vrot.lane.b32.xlu0 %v636, 32
    %v638 = vpop.permute.xlu0 %637
    %v639 = vsel %vm297, %v638, 0
    %641 = vmatpush.msra.mxu0 0.0
    %642 = vmatpush.msra.mxu0 0.0
    %643 = vmatpush.msra.mxu0 0.0
    %644 = vmatpush.msra.mxu0 0.0
    %645 = vmatpush.msra.mxu0 0.0
    %646 = vmatpush.msra.mxu0 0.0
    %647 = vmatpush.msra.mxu0 0.0
    %648 = vmatpush.msra.mxu0 0.0
    %649 = vmatpush.msra.mxu0 0.0
    %650 = vmatpush.msra.mxu0 0.0
    %651 = vmatpush.msra.mxu0 0.0
    %652 = vmatpush.msra.mxu0 0.0
    %653 = vmatpush.msra.mxu0 %v635
    %654 = vmatpush.msra.mxu0 %v634
    %655 = vmatpush.msra.mxu0 %v633
    %656 = vmatpush.msra.mxu0 %v632
    %657 = vmatmul.f32.gmra.mxu0 %v639
    %v658 = vpop.f32.mrf.mxu0
    %v659 = vadd.f32 0.0, %v658
    %660 = vdwg.mxu0
    %662 = vrot.lane.b32.xlu0 %v627, 32
    %v663 = vpop.permute.xlu0 %662
    %v664 = vsel %vm297, %v663, 0
    %666 = vmatpush.msra.mxu0 0.0
    %667 = vmatpush.msra.mxu0 0.0
    %668 = vmatpush.msra.mxu0 0.0
    %669 = vmatpush.msra.mxu0 0.0
    %670 = vmatpush.msra.mxu0 0.0
    %671 = vmatpush.msra.mxu0 0.0
    %672 = vmatpush.msra.mxu0 0.0
    %673 = vmatpush.msra.mxu0 0.0
    %674 = vmatpush.msra.mxu0 0.0
    %675 = vmatpush.msra.mxu0 0.0
    %676 = vmatpush.msra.mxu0 0.0
    %677 = vmatpush.msra.mxu0 0.0
    %678 = vmatpush.msra.mxu0 %v631
    %679 = vmatpush.msra.mxu0 %v630
    %680 = vmatpush.msra.mxu0 %v629
    %681 = vmatpush.msra.mxu0 %v628
    %682 = vmatmul.f32.gmra.mxu0 %v664
    %v683 = vpop.f32.mrf.mxu0
    %v684 = vadd.f32 %v659, %v683
    %685 = vdwg.mxu0
    %v686 = vld [vmem:[#allocation6 + $0x130] ss:$0 sm:$0xff]
    %v687 = vadd.f32 %v684, %v686
    %vm688 = vcmask 25600
    %689 = vst.msk [vmem:[#allocation7] sm:$0x3] %vm688, %v687
    // Predicated region
    $region18: #{tpu_custom_call.1} parent=1 // pred_check
      _
    $region19: #{tpu_custom_call.1} parent=1 // pred_check_branch
      %691 = sbr.rel (0) target = $region21
    $region20: #{tpu_custom_call.1} parent=1 // pred_region
      %693 = vsyncadd [#allocation4], 0
      %s695 = sshll.u32 [#allocation7], 4
      %s696 = int_to_ptr.vmem [resolvable:$true] %s695
      %s697 = sshll.u32 %s2, 4
      %s698 = int_to_ptr.hbm [resolvable:$true] %s697
      %700 = dma.vmem_to_hbm [thread:$0]  %s696, 32, %s698, [#allocation4]
    $region21: #{tpu_custom_call.1} parent=1 // pred_fallthru
      _
    // Predicated region
    $region22: #{tpu_custom_call.1} parent=1 // pred_check
      _
    $region23: #{tpu_custom_call.1} parent=1 // pred_check_branch
      %702 = sbr.rel (0) target = $region25
    $region24: #{tpu_custom_call.1} parent=1 // pred_region
      %704 = dma.done [#allocation4], 32
    $region25: #{tpu_custom_call.1} parent=1 // pred_fallthru
      _
    %705 = vsyncpa [#allocation3], 1
    %706 = vsyncpa [#allocation4], 1
    %707 = vsyncpa [#allocation5], 1

</llo_original>
